<compile_context>
chip_gen: v7x
topology: tpu7x:2x2x1
jax: 0.10.0
libtpu: 0.0.40
codegen_flags: <defaults>
</compile_context>

<pallas_src>
import jax
import jax.numpy as jnp
from jax.experimental import pallas as pl
from jax.experimental.pallas import tpu as pltpu


BN_EPS = 1e-5
LANE = 128      # lane width: pad feature dims to a multiple of this
SUBLANE = 8     # sublane width: pad batch dim to a multiple of this


def _ceil_to(x, m):
    return ((x + m - 1) // m) * m


def _pad2d(a, rows, cols):
    """Zero-pad a 2-D array up to (rows, cols)."""
    return jnp.pad(a, ((0, rows - a.shape[0]), (0, cols - a.shape[1])))


def _make_fused_mlp_kernel(n_layers, n_real):
    """Build the fused kernel body for a fixed (static) layer count / batch."""
    inv_n = 1.0 / float(n_real)

    def kernel(*refs):
        # refs = (x, row_mask, [w, b, gamma, beta] * hidden, w_last, b_last, out)
        x_ref = refs[0]
        mask_ref = refs[1]
        o_ref = refs[-1]

        row_mask = mask_ref[...]          # (n_pad, 1): 1 for real rows, 0 for pad
        y = x_ref[...]                    # (n_pad, in_pad) f32, lane-dense

        idx = 2
        for layer in range(n_layers):
            w = refs[idx][...]            # (in_pad, out_pad)
            b = refs[idx + 1][...]        # (1, out_pad)

            # Linear on the MXU (f32 accumulation) + bias + ReLU.
            y = jnp.dot(y, w, preferred_element_type=jnp.float32) + b
            y = jnp.maximum(y, 0.0)

            if layer != n_layers - 1:
                gamma = refs[idx + 2][...]
                beta = refs[idx + 3][...]
                idx += 4

                # BatchNorm1d, training mode: batch mean and *biased* batch
                # variance, computed only over the real (un-padded) rows.
                ym = y * row_mask
                mean = jnp.sum(ym, axis=0, keepdims=True) * inv_n
                d = (y - mean) * row_mask
                var = jnp.sum(d * d, axis=0, keepdims=True) * inv_n
                inv = jax.lax.rsqrt(var + BN_EPS)     # EUP transcendental
                # Re-mask so padded batch rows stay exactly zero for the next
                # layer's matmul / statistics.
                y = (gamma * (y - mean) * inv + beta) * row_mask
            else:
                idx += 2

        o_ref[...] = y.astype(o_ref.dtype)

    return kernel


def mlp_forward(x, params):
    """Fused Pallas forward pass. x: (N, in_features) f32."""
    n, in_dim = x.shape
    n_layers = len(params)

    dims = [in_dim] + [p["w"].shape[1] for p in params]
    dims_pad = [_ceil_to(d, LANE) for d in dims]
    n_pad = _ceil_to(n, SUBLANE)

    # Row-validity mask for the (possibly) padded batch dimension.
    row_mask = (jnp.arange(n_pad) < n).astype(jnp.float32).reshape(n_pad, 1)

    inputs = [
        _pad2d(x.astype(jnp.float32), n_pad, dims_pad[0]),
        row_mask,
    ]
    in_specs = [
        pl.BlockSpec((n_pad, dims_pad[0]), lambda i: (0, 0)),
        pl.BlockSpec((n_pad, 1), lambda i: (0, 0)),
    ]

    for li, p in enumerate(params):
        ip, op = dims_pad[li], dims_pad[li + 1]
        inputs.append(_pad2d(p["w"].astype(jnp.float32), ip, op))
        in_specs.append(pl.BlockSpec((ip, op), lambda i: (0, 0)))
        inputs.append(_pad2d(p["b"].reshape(1, -1).astype(jnp.float32), 1, op))
        in_specs.append(pl.BlockSpec((1, op), lambda i: (0, 0)))
        if li != n_layers - 1:
            inputs.append(_pad2d(p["gamma"].reshape(1, -1).astype(jnp.float32), 1, op))
            in_specs.append(pl.BlockSpec((1, op), lambda i: (0, 0)))
            inputs.append(_pad2d(p["beta"].reshape(1, -1).astype(jnp.float32), 1, op))
            in_specs.append(pl.BlockSpec((1, op), lambda i: (0, 0)))

    out_pad = dims_pad[-1]
    kernel = _make_fused_mlp_kernel(n_layers, n)

    out_p = pl.pallas_call(
        kernel,
        out_shape=jax.ShapeDtypeStruct((n_pad, out_pad), jnp.float32),
        grid=(1,),
        in_specs=in_specs,
        out_specs=pl.BlockSpec((n_pad, out_pad), lambda i: (0, 0)),
        compiler_params=pltpu.CompilerParams(
            dimension_semantics=("arbitrary",),
        ),
    )(*inputs)

    # Single un-padding slice at the very end (lane-dense store inside kernel).
    return out_p[:n, : dims[-1]]


def init_mlp_params(key, layer_sizes):
    """Deterministic parameter init matching the shapes of the PyTorch module."""
    params = []
    for s1, s2 in zip(layer_sizes[:-1], layer_sizes[1:]):
        key, kw, kb = jax.random.split(key, 3)
        bound = 1.0 / jnp.sqrt(s1)
        # stored as (in, out) -> equivalent to PyTorch W (out, in) transposed
        w = jax.random.uniform(kw, (s1, s2), jnp.float32, -bound, bound)
        b = jax.random.uniform(kb, (s2,), jnp.float32, -bound, bound)
        gamma = jnp.ones((s2,), jnp.float32)
        beta = jnp.zeros((s2,), jnp.float32)
        params.append({"w": w, "b": b, "gamma": gamma, "beta": beta})
    return params


def mlp_forward_ref(x, params):
    """Pure-JAX reference for correctness checking."""
    n_linear = len(params)
    for i, p in enumerate(params):
        y = x @ p["w"] + p["b"]
        y = jnp.maximum(y, 0.0)
        if i != n_linear - 1:
            mean = jnp.mean(y, axis=0, keepdims=True)
            var = jnp.mean((y - mean) ** 2, axis=0, keepdims=True)
            y = p["gamma"] * (y - mean) / jnp.sqrt(var + BN_EPS) + p["beta"]
        x = y
    return x


if __name__ == "__main__":
    layer_sizes = [32, 64, 48, 16]
    batch = 8

    key = jax.random.PRNGKey(0)
    key, kx = jax.random.split(key)
    x = jax.random.normal(kx, (batch, layer_sizes[0]), jnp.float32)
    params = init_mlp_params(key, layer_sizes)

    out = mlp_forward(x, params)
    out = jax.block_until_ready(out)

    ref = mlp_forward_ref(x, params)
    assert out.shape == (batch, layer_sizes[-1])
    assert jnp.allclose(out, ref, atol=1e-4, rtol=1e-4), "mismatch vs JAX reference"

    print("KERNEL_OK")
</pallas_src>

<mosaic_0001>
module attributes {stable_mosaic.version = 11 : i64} {
  func.func @kernel(%arg0: i32, %arg1: memref<8x128xf32, #tpu.memory_space<vmem>>, %arg2: memref<8x1xf32, #tpu.memory_space<vmem>>, %arg3: memref<128x128xf32, #tpu.memory_space<vmem>>, %arg4: memref<1x128xf32, #tpu.memory_space<vmem>>, %arg5: memref<1x128xf32, #tpu.memory_space<vmem>>, %arg6: memref<1x128xf32, #tpu.memory_space<vmem>>, %arg7: memref<128x128xf32, #tpu.memory_space<vmem>>, %arg8: memref<1x128xf32, #tpu.memory_space<vmem>>, %arg9: memref<1x128xf32, #tpu.memory_space<vmem>>, %arg10: memref<1x128xf32, #tpu.memory_space<vmem>>, %arg11: memref<128x128xf32, #tpu.memory_space<vmem>>, %arg12: memref<1x128xf32, #tpu.memory_space<vmem>>, %arg13: memref<8x128xf32, #tpu.memory_space<vmem>>) attributes {dimension_semantics = [#tpu.dimension_semantics<arbitrary>], iteration_bounds = array<i64: 1>, scalar_prefetch = 0 : i64, scratch_operands = 0 : i64, tpu.core_type = #tpu.core_type<tc>, window_params = [{pipeline_mode = #tpu.pipeline_mode<synchronous>, transform_indices = @transform_0, window_bounds = array<i64: 8, 128>}, {pipeline_mode = #tpu.pipeline_mode<synchronous>, transform_indices = @transform_1, window_bounds = array<i64: 8, 1>}, {pipeline_mode = #tpu.pipeline_mode<synchronous>, transform_indices = @transform_2, window_bounds = array<i64: 128, 128>}, {pipeline_mode = #tpu.pipeline_mode<synchronous>, transform_indices = @transform_3, window_bounds = array<i64: 1, 128>}, {pipeline_mode = #tpu.pipeline_mode<synchronous>, transform_indices = @transform_4, window_bounds = array<i64: 1, 128>}, {pipeline_mode = #tpu.pipeline_mode<synchronous>, transform_indices = @transform_5, window_bounds = array<i64: 1, 128>}, {pipeline_mode = #tpu.pipeline_mode<synchronous>, transform_indices = @transform_6, window_bounds = array<i64: 128, 128>}, {pipeline_mode = #tpu.pipeline_mode<synchronous>, transform_indices = @transform_7, window_bounds = array<i64: 1, 128>}, {pipeline_mode = #tpu.pipeline_mode<synchronous>, transform_indices = @transform_8, window_bounds = array<i64: 1, 128>}, {pipeline_mode = #tpu.pipeline_mode<synchronous>, transform_indices = @transform_9, window_bounds = array<i64: 1, 128>}, {pipeline_mode = #tpu.pipeline_mode<synchronous>, transform_indices = @transform_10, window_bounds = array<i64: 128, 128>}, {pipeline_mode = #tpu.pipeline_mode<synchronous>, transform_indices = @transform_11, window_bounds = array<i64: 1, 128>}, {pipeline_mode = #tpu.pipeline_mode<synchronous>, transform_indices = @transform_12, window_bounds = array<i64: 8, 128>}]} {
    %c0 = arith.constant 0 : index
    %c0_0 = arith.constant 0 : index
    %0 = vector.load %arg2[%c0, %c0_0] : memref<8x1xf32, #tpu.memory_space<vmem>>, vector<8x1xf32>
    %c0_1 = arith.constant 0 : index
    %c0_2 = arith.constant 0 : index
    %1 = vector.load %arg1[%c0_1, %c0_2] : memref<8x128xf32, #tpu.memory_space<vmem>>, vector<8x128xf32>
    %c0_3 = arith.constant 0 : index
    %c0_4 = arith.constant 0 : index
    %2 = vector.load %arg3[%c0_3, %c0_4] : memref<128x128xf32, #tpu.memory_space<vmem>>, vector<128x128xf32>
    %c0_5 = arith.constant 0 : index
    %c0_6 = arith.constant 0 : index
    %3 = vector.load %arg4[%c0_5, %c0_6] : memref<1x128xf32, #tpu.memory_space<vmem>>, vector<1x128xf32>
    %cst = arith.constant dense<0.000000e+00> : vector<8x128xf32>
    %4 = tpu.matmul %1, %2, %cst {dimension_numbers = #tpu.dot_dimension_numbers<[1], [0], [0], [1], [0, 0, 1, 1], [], []>} : vector<8x128xf32>, vector<128x128xf32>, vector<8x128xf32> -> vector<8x128xf32>
    %5 = vector.broadcast %3 : vector<1x128xf32> to vector<8x128xf32>
    %6 = arith.addf %4, %5 : vector<8x128xf32>
    %cst_7 = arith.constant 0.000000e+00 : f32
    %7 = vector.broadcast %cst_7 : f32 to vector<8x128xf32>
    %8 = arith.maximumf %6, %7 : vector<8x128xf32>
    %c0_8 = arith.constant 0 : index
    %c0_9 = arith.constant 0 : index
    %9 = vector.load %arg5[%c0_8, %c0_9] : memref<1x128xf32, #tpu.memory_space<vmem>>, vector<1x128xf32>
    %c0_10 = arith.constant 0 : index
    %c0_11 = arith.constant 0 : index
    %10 = vector.load %arg6[%c0_10, %c0_11] : memref<1x128xf32, #tpu.memory_space<vmem>>, vector<1x128xf32>
    %11 = vector.broadcast %0 : vector<8x1xf32> to vector<8x128xf32>
    %12 = arith.mulf %8, %11 : vector<8x128xf32>
    %cst_12 = arith.constant dense<0.000000e+00> : vector<128xf32>
    %13 = vector.multi_reduction <add>, %12, %cst_12 [0] : vector<8x128xf32> to vector<128xf32>
    %14 = vector.shape_cast %13 : vector<128xf32> to vector<1x128xf32>
    %cst_13 = arith.constant 1.250000e-01 : f32
    %15 = vector.broadcast %cst_13 : f32 to vector<1x128xf32>
    %16 = arith.mulf %14, %15 : vector<1x128xf32>
    %17 = vector.broadcast %16 : vector<1x128xf32> to vector<8x128xf32>
    %18 = arith.subf %8, %17 : vector<8x128xf32>
    %19 = vector.broadcast %0 : vector<8x1xf32> to vector<8x128xf32>
    %20 = arith.mulf %18, %19 : vector<8x128xf32>
    %21 = arith.mulf %20, %20 : vector<8x128xf32>
    %cst_14 = arith.constant dense<0.000000e+00> : vector<128xf32>
    %22 = vector.multi_reduction <add>, %21, %cst_14 [0] : vector<8x128xf32> to vector<128xf32>
    %23 = vector.shape_cast %22 : vector<128xf32> to vector<1x128xf32>
    %cst_15 = arith.constant 1.250000e-01 : f32
    %24 = vector.broadcast %cst_15 : f32 to vector<1x128xf32>
    %25 = arith.mulf %23, %24 : vector<1x128xf32>
    %cst_16 = arith.constant 9.99999974E-6 : f32
    %26 = vector.broadcast %cst_16 : f32 to vector<1x128xf32>
    %27 = arith.addf %25, %26 : vector<1x128xf32>
    %28 = math.rsqrt %27 : vector<1x128xf32>
    %29 = vector.broadcast %16 : vector<1x128xf32> to vector<8x128xf32>
    %30 = arith.subf %8, %29 : vector<8x128xf32>
    %31 = vector.broadcast %9 : vector<1x128xf32> to vector<8x128xf32>
    %32 = arith.mulf %31, %30 : vector<8x128xf32>
    %33 = vector.broadcast %28 : vector<1x128xf32> to vector<8x128xf32>
    %34 = arith.mulf %32, %33 : vector<8x128xf32>
    %35 = vector.broadcast %10 : vector<1x128xf32> to vector<8x128xf32>
    %36 = arith.addf %34, %35 : vector<8x128xf32>
    %37 = vector.broadcast %0 : vector<8x1xf32> to vector<8x128xf32>
    %38 = arith.mulf %36, %37 : vector<8x128xf32>
    %c0_17 = arith.constant 0 : index
    %c0_18 = arith.constant 0 : index
    %39 = vector.load %arg7[%c0_17, %c0_18] : memref<128x128xf32, #tpu.memory_space<vmem>>, vector<128x128xf32>
    %c0_19 = arith.constant 0 : index
    %c0_20 = arith.constant 0 : index
    %40 = vector.load %arg8[%c0_19, %c0_20] : memref<1x128xf32, #tpu.memory_space<vmem>>, vector<1x128xf32>
    %cst_21 = arith.constant dense<0.000000e+00> : vector<8x128xf32>
    %41 = tpu.matmul %38, %39, %cst_21 {dimension_numbers = #tpu.dot_dimension_numbers<[1], [0], [0], [1], [0, 0, 1, 1], [], []>} : vector<8x128xf32>, vector<128x128xf32>, vector<8x128xf32> -> vector<8x128xf32>
    %42 = vector.broadcast %40 : vector<1x128xf32> to vector<8x128xf32>
    %43 = arith.addf %41, %42 : vector<8x128xf32>
    %cst_22 = arith.constant 0.000000e+00 : f32
    %44 = vector.broadcast %cst_22 : f32 to vector<8x128xf32>
    %45 = arith.maximumf %43, %44 : vector<8x128xf32>
    %c0_23 = arith.constant 0 : index
    %c0_24 = arith.constant 0 : index
    %46 = vector.load %arg9[%c0_23, %c0_24] : memref<1x128xf32, #tpu.memory_space<vmem>>, vector<1x128xf32>
    %c0_25 = arith.constant 0 : index
    %c0_26 = arith.constant 0 : index
    %47 = vector.load %arg10[%c0_25, %c0_26] : memref<1x128xf32, #tpu.memory_space<vmem>>, vector<1x128xf32>
    %48 = vector.broadcast %0 : vector<8x1xf32> to vector<8x128xf32>
    %49 = arith.mulf %45, %48 : vector<8x128xf32>
    %cst_27 = arith.constant dense<0.000000e+00> : vector<128xf32>
    %50 = vector.multi_reduction <add>, %49, %cst_27 [0] : vector<8x128xf32> to vector<128xf32>
    %51 = vector.shape_cast %50 : vector<128xf32> to vector<1x128xf32>
    %cst_28 = arith.constant 1.250000e-01 : f32
    %52 = vector.broadcast %cst_28 : f32 to vector<1x128xf32>
    %53 = arith.mulf %51, %52 : vector<1x128xf32>
    %54 = vector.broadcast %53 : vector<1x128xf32> to vector<8x128xf32>
    %55 = arith.subf %45, %54 : vector<8x128xf32>
    %56 = vector.broadcast %0 : vector<8x1xf32> to vector<8x128xf32>
    %57 = arith.mulf %55, %56 : vector<8x128xf32>
    %58 = arith.mulf %57, %57 : vector<8x128xf32>
    %cst_29 = arith.constant dense<0.000000e+00> : vector<128xf32>
    %59 = vector.multi_reduction <add>, %58, %cst_29 [0] : vector<8x128xf32> to vector<128xf32>
    %60 = vector.shape_cast %59 : vector<128xf32> to vector<1x128xf32>
    %cst_30 = arith.constant 1.250000e-01 : f32
    %61 = vector.broadcast %cst_30 : f32 to vector<1x128xf32>
    %62 = arith.mulf %60, %61 : vector<1x128xf32>
    %cst_31 = arith.constant 9.99999974E-6 : f32
    %63 = vector.broadcast %cst_31 : f32 to vector<1x128xf32>
    %64 = arith.addf %62, %63 : vector<1x128xf32>
    %65 = math.rsqrt %64 : vector<1x128xf32>
    %66 = vector.broadcast %53 : vector<1x128xf32> to vector<8x128xf32>
    %67 = arith.subf %45, %66 : vector<8x128xf32>
    %68 = vector.broadcast %46 : vector<1x128xf32> to vector<8x128xf32>
    %69 = arith.mulf %68, %67 : vector<8x128xf32>
    %70 = vector.broadcast %65 : vector<1x128xf32> to vector<8x128xf32>
    %71 = arith.mulf %69, %70 : vector<8x128xf32>
    %72 = vector.broadcast %47 : vector<1x128xf32> to vector<8x128xf32>
    %73 = arith.addf %71, %72 : vector<8x128xf32>
    %74 = vector.broadcast %0 : vector<8x1xf32> to vector<8x128xf32>
    %75 = arith.mulf %73, %74 : vector<8x128xf32>
    %c0_32 = arith.constant 0 : index
    %c0_33 = arith.constant 0 : index
    %76 = vector.load %arg11[%c0_32, %c0_33] : memref<128x128xf32, #tpu.memory_space<vmem>>, vector<128x128xf32>
    %c0_34 = arith.constant 0 : index
    %c0_35 = arith.constant 0 : index
    %77 = vector.load %arg12[%c0_34, %c0_35] : memref<1x128xf32, #tpu.memory_space<vmem>>, vector<1x128xf32>
    %cst_36 = arith.constant dense<0.000000e+00> : vector<8x128xf32>
    %78 = tpu.matmul %75, %76, %cst_36 {dimension_numbers = #tpu.dot_dimension_numbers<[1], [0], [0], [1], [0, 0, 1, 1], [], []>} : vector<8x128xf32>, vector<128x128xf32>, vector<8x128xf32> -> vector<8x128xf32>
    %79 = vector.broadcast %77 : vector<1x128xf32> to vector<8x128xf32>
    %80 = arith.addf %78, %79 : vector<8x128xf32>
    %cst_37 = arith.constant 0.000000e+00 : f32
    %81 = vector.broadcast %cst_37 : f32 to vector<8x128xf32>
    %82 = arith.maximumf %80, %81 : vector<8x128xf32>
    %c0_38 = arith.constant 0 : index
    %c0_39 = arith.constant 0 : index
    %83 = vector.load %arg13[%c0_38, %c0_39] : memref<8x128xf32, #tpu.memory_space<vmem>>, vector<8x128xf32>
    tpu.vector_store %arg13[%c0_38, %c0_39], %82 {strides = array<i32>} : memref<8x128xf32, #tpu.memory_space<vmem>>, vector<8x128xf32>,
    return
  }
  func.func @transform_0(%arg0: i32) -> (i32, i32) {
    %c0_i32 = arith.constant 0 : i32
    %c0_i32_0 = arith.constant 0 : i32
    %c0_i32_1 = arith.constant 0 : i32
    return %c0_i32, %c0_i32_0 : i32, i32
  }
  func.func @transform_1(%arg0: i32) -> (i32, i32) {
    %c0_i32 = arith.constant 0 : i32
    %c0_i32_0 = arith.constant 0 : i32
    %c0_i32_1 = arith.constant 0 : i32
    return %c0_i32, %c0_i32_0 : i32, i32
  }
  func.func @transform_2(%arg0: i32) -> (i32, i32) {
    %c0_i32 = arith.constant 0 : i32
    %c0_i32_0 = arith.constant 0 : i32
    %c0_i32_1 = arith.constant 0 : i32
    return %c0_i32, %c0_i32_0 : i32, i32
  }
  func.func @transform_3(%arg0: i32) -> (i32, i32) {
    %c0_i32 = arith.constant 0 : i32
    %c0_i32_0 = arith.constant 0 : i32
    %c0_i32_1 = arith.constant 0 : i32
    return %c0_i32, %c0_i32_0 : i32, i32
  }
  func.func @transform_4(%arg0: i32) -> (i32, i32) {
    %c0_i32 = arith.constant 0 : i32
    %c0_i32_0 = arith.constant 0 : i32
    %c0_i32_1 = arith.constant 0 : i32
    return %c0_i32, %c0_i32_0 : i32, i32
  }
  func.func @transform_5(%arg0: i32) -> (i32, i32) {
    %c0_i32 = arith.constant 0 : i32
    %c0_i32_0 = arith.constant 0 : i32
    %c0_i32_1 = arith.constant 0 : i32
    return %c0_i32, %c0_i32_0 : i32, i32
  }
  func.func @transform_6(%arg0: i32) -> (i32, i32) {
    %c0_i32 = arith.constant 0 : i32
    %c0_i32_0 = arith.constant 0 : i32
    %c0_i32_1 = arith.constant 0 : i32
    return %c0_i32, %c0_i32_0 : i32, i32
  }
  func.func @transform_7(%arg0: i32) -> (i32, i32) {
    %c0_i32 = arith.constant 0 : i32
    %c0_i32_0 = arith.constant 0 : i32
    %c0_i32_1 = arith.constant 0 : i32
    return %c0_i32, %c0_i32_0 : i32, i32
  }
  func.func @transform_8(%arg0: i32) -> (i32, i32) {
    %c0_i32 = arith.constant 0 : i32
    %c0_i32_0 = arith.constant 0 : i32
    %c0_i32_1 = arith.constant 0 : i32
    return %c0_i32, %c0_i32_0 : i32, i32
  }
  func.func @transform_9(%arg0: i32) -> (i32, i32) {
    %c0_i32 = arith.constant 0 : i32
    %c0_i32_0 = arith.constant 0 : i32
    %c0_i32_1 = arith.constant 0 : i32
    return %c0_i32, %c0_i32_0 : i32, i32
  }
  func.func @transform_10(%arg0: i32) -> (i32, i32) {
    %c0_i32 = arith.constant 0 : i32
    %c0_i32_0 = arith.constant 0 : i32
    %c0_i32_1 = arith.constant 0 : i32
    return %c0_i32, %c0_i32_0 : i32, i32
  }
  func.func @transform_11(%arg0: i32) -> (i32, i32) {
    %c0_i32 = arith.constant 0 : i32
    %c0_i32_0 = arith.constant 0 : i32
    %c0_i32_1 = arith.constant 0 : i32
    return %c0_i32, %c0_i32_0 : i32, i32
  }
  func.func @transform_12(%arg0: i32) -> (i32, i32) {
    %c0_i32 = arith.constant 0 : i32
    %c0_i32_0 = arith.constant 0 : i32
    %c0_i32_1 = arith.constant 0 : i32
    return %c0_i32, %c0_i32_0 : i32, i32
  }
}

</mosaic_0001>

<llo_original>
// kernel: tpu_custom_call.1
$region0: #{tpu_custom_call.1}
  #allocation0 [shape = 'u32[]', space=smem, size = 0x4, offset = 0x4, fixed_abs, tag = 'smem constant byte address 0x4 - core index']
  #allocation1 [shape = 'u32[144,128]{1,0:T(1,128)}', space=vmem, size = 0x12000, scoped, tag = 'internal scratch']
  %s0 = inlined_call_operand.vmem [shape: f32[8,128], index: 0, kind: input, shape index: {}]
  %s1 = inlined_call_operand.vmem [shape: f32[8,1], index: 1, kind: input, shape index: {}]
  %s2 = inlined_call_operand.hbm [shape: f32[128,128], index: 2, kind: input, shape index: {}]
  %s3 = inlined_call_operand.vmem [shape: f32[1,128], index: 3, kind: input, shape index: {}]
  %s4 = inlined_call_operand.vmem [shape: f32[1,128], index: 4, kind: input, shape index: {}]
  %s5 = inlined_call_operand.vmem [shape: f32[1,128], index: 5, kind: input, shape index: {}]
  %s6 = inlined_call_operand.hbm [shape: f32[128,128], index: 6, kind: input, shape index: {}]
  %s7 = inlined_call_operand.vmem [shape: f32[1,128], index: 7, kind: input, shape index: {}]
  %s8 = inlined_call_operand.vmem [shape: f32[1,128], index: 8, kind: input, shape index: {}]
  %s9 = inlined_call_operand.vmem [shape: f32[1,128], index: 9, kind: input, shape index: {}]
  %s10 = inlined_call_operand.hbm [shape: f32[128,128], index: 10, kind: input, shape index: {}]
  %s11 = inlined_call_operand.vmem [shape: f32[1,128], index: 11, kind: input, shape index: {}]
  %s12 = inlined_call_operand.hbm [shape: f32[8,128], index: 12, kind: output, shape index: {}]
  %s13 = sld [smem:[#allocation0]]
  $region70: #{tpu_custom_call.1} parent=0
    _
  %s15 = ssub.s32 1, %s13
  %s16 = scalar_select 0, %s15, %s13
  $region1: #{tpu_custom_call.1} parent=0
    #allocation2 [shape = 'u8[65536]{0}', space=vmem, size = 0x10000, scoped, tag = 'input window, operand 2, single buffered']
    #allocation3 [shape = 's32[1]{0}', space=sflag, size = 0x4, scoped, tag = 'scoped memory for tpu_custom_call.1']
    #allocation4 [shape = 's32[1]{0}', space=sflag, size = 0x4, scoped, tag = 'scoped memory for tpu_custom_call.1']
    #allocation5 [shape = 'u8[65536]{0}', space=vmem, size = 0x10000, scoped, tag = 'input window, operand 6, single buffered']
    #allocation6 [shape = 's32[1]{0}', space=sflag, size = 0x4, scoped, tag = 'scoped memory for tpu_custom_call.1']
    #allocation7 [shape = 'u8[65536]{0}', space=vmem, size = 0x10000, scoped, tag = 'input window, operand 10, single buffered']
    #allocation8 [shape = 'u8[4096]{0}', space=vmem, size = 0x1000, scoped, tag = 'output window, operand 0, single buffered']
    %17 = vsyncpa [#allocation3], 0
    %18 = vsyncpa [#allocation6], 0
    %19 = vsyncpa [#allocation4], 0
    // Predicated region
    $region2: #{tpu_custom_call.1} parent=1 // pred_check
      _
    $region3: #{tpu_custom_call.1} parent=1 // pred_check_branch
      %21 = sbr.rel (0) target = $region5
    $region4: #{tpu_custom_call.1} parent=1 // pred_region
      _
    $region5: #{tpu_custom_call.1} parent=1 // pred_fallthru
      _
    // Predicated region
    $region6: #{tpu_custom_call.1} parent=1 // pred_check
      _
    $region7: #{tpu_custom_call.1} parent=1 // pred_check_branch
      %23 = sbr.rel (0) target = $region9
    $region8: #{tpu_custom_call.1} parent=1 // pred_region
      _
    $region9: #{tpu_custom_call.1} parent=1 // pred_fallthru
      _
    // Predicated region
    $region10: #{tpu_custom_call.1} parent=1 // pred_check
      _
    $region11: #{tpu_custom_call.1} parent=1 // pred_check_branch
      %25 = sbr.rel (0) target = $region13
    $region12: #{tpu_custom_call.1} parent=1 // pred_region
      %s27 = ssub.s32 2048, 2048
      %28 = vsyncadd [#allocation3], %s27
      %s29 = sshll.u32 [#allocation2], 4
      %s30 = int_to_ptr.vmem [resolvable:$true] %s29
      %35 = dma.hbm_to_vmem [thread:$0]  %s2, 2048, %s30, [#allocation3], 128, 128, 8
    $region13: #{tpu_custom_call.1} parent=1 // pred_fallthru
      _
    // Predicated region
    $region14: #{tpu_custom_call.1} parent=1 // pred_check
      _
    $region15: #{tpu_custom_call.1} parent=1 // pred_check_branch
      %37 = sbr.rel (0) target = $region17
    $region16: #{tpu_custom_call.1} parent=1 // pred_region
      _
    $region17: #{tpu_custom_call.1} parent=1 // pred_fallthru
      _
    // Predicated region
    $region18: #{tpu_custom_call.1} parent=1 // pred_check
      _
    $region19: #{tpu_custom_call.1} parent=1 // pred_check_branch
      %39 = sbr.rel (0) target = $region21
    $region20: #{tpu_custom_call.1} parent=1 // pred_region
      _
    $region21: #{tpu_custom_call.1} parent=1 // pred_fallthru
      _
    // Predicated region
    $region22: #{tpu_custom_call.1} parent=1 // pred_check
      _
    $region23: #{tpu_custom_call.1} parent=1 // pred_check_branch
      %41 = sbr.rel (0) target = $region25
    $region24: #{tpu_custom_call.1} parent=1 // pred_region
      _
    $region25: #{tpu_custom_call.1} parent=1 // pred_fallthru
      _
    // Predicated region
    $region26: #{tpu_custom_call.1} parent=1 // pred_check
      _
    $region27: #{tpu_custom_call.1} parent=1 // pred_check_branch
      %43 = sbr.rel (0) target = $region29
    $region28: #{tpu_custom_call.1} parent=1 // pred_region
      %s45 = ssub.s32 2048, 2048
      %46 = vsyncadd [#allocation6], %s45
      %s47 = sshll.u32 [#allocation5], 4
      %s48 = int_to_ptr.vmem [resolvable:$true] %s47
      %53 = dma.hbm_to_vmem [thread:$0]  %s6, 2048, %s48, [#allocation6], 128, 128, 8
    $region29: #{tpu_custom_call.1} parent=1 // pred_fallthru
      _
    // Predicated region
    $region30: #{tpu_custom_call.1} parent=1 // pred_check
      _
    $region31: #{tpu_custom_call.1} parent=1 // pred_check_branch
      %55 = sbr.rel (0) target = $region33
    $region32: #{tpu_custom_call.1} parent=1 // pred_region
      _
    $region33: #{tpu_custom_call.1} parent=1 // pred_fallthru
      _
    // Predicated region
    $region34: #{tpu_custom_call.1} parent=1 // pred_check
      _
    $region35: #{tpu_custom_call.1} parent=1 // pred_check_branch
      %57 = sbr.rel (0) target = $region37
    $region36: #{tpu_custom_call.1} parent=1 // pred_region
      _
    $region37: #{tpu_custom_call.1} parent=1 // pred_fallthru
      _
    // Predicated region
    $region38: #{tpu_custom_call.1} parent=1 // pred_check
      _
    $region39: #{tpu_custom_call.1} parent=1 // pred_check_branch
      %59 = sbr.rel (0) target = $region41
    $region40: #{tpu_custom_call.1} parent=1 // pred_region
      _
    $region41: #{tpu_custom_call.1} parent=1 // pred_fallthru
      _
    // Predicated region
    $region42: #{tpu_custom_call.1} parent=1 // pred_check
      _
    $region43: #{tpu_custom_call.1} parent=1 // pred_check_branch
      %61 = sbr.rel (0) target = $region45
    $region44: #{tpu_custom_call.1} parent=1 // pred_region
      %s63 = ssub.s32 2048, 2048
      %64 = vsyncadd [#allocation6], %s63
      %s65 = sshll.u32 [#allocation7], 4
      %s66 = int_to_ptr.vmem [resolvable:$true] %s65
      %71 = dma.hbm_to_vmem [thread:$0]  %s10, 2048, %s66, [#allocation6], 128, 128, 8
    $region45: #{tpu_custom_call.1} parent=1 // pred_fallthru
      _
    // Predicated region
    $region46: #{tpu_custom_call.1} parent=1 // pred_check
      _
    $region47: #{tpu_custom_call.1} parent=1 // pred_check_branch
      %73 = sbr.rel (0) target = $region49
    $region48: #{tpu_custom_call.1} parent=1 // pred_region
      _
    $region49: #{tpu_custom_call.1} parent=1 // pred_fallthru
      _
    // Predicated region
    $region50: #{tpu_custom_call.1} parent=1 // pred_check
      _
    $region51: #{tpu_custom_call.1} parent=1 // pred_check_branch
      %75 = sbr.rel (0) target = $region53
    $region52: #{tpu_custom_call.1} parent=1 // pred_region
      %76 = dma.done [#allocation3], 2048
    $region53: #{tpu_custom_call.1} parent=1 // pred_fallthru
      _
    // Predicated region
    $region54: #{tpu_custom_call.1} parent=1 // pred_check
      _
    $region55: #{tpu_custom_call.1} parent=1 // pred_check_branch
      %78 = sbr.rel (0) target = $region57
    $region56: #{tpu_custom_call.1} parent=1 // pred_region
      %79 = dma.done [#allocation6], 2048
    $region57: #{tpu_custom_call.1} parent=1 // pred_fallthru
      _
    // Predicated region
    $region58: #{tpu_custom_call.1} parent=1 // pred_check
      _
    $region59: #{tpu_custom_call.1} parent=1 // pred_check_branch
      %81 = sbr.rel (0) target = $region61
    $region60: #{tpu_custom_call.1} parent=1 // pred_region
      %82 = dma.done [#allocation6], 2048
    $region61: #{tpu_custom_call.1} parent=1 // pred_fallthru
      _
    %v83 = vld [vmem:[%s1] sm:$0xff]
    %v84 = vld [vmem:[%s0] sm:$0xff]
    %v85 = vld [vmem:[#allocation2] sm:$0xff]
    %v86 = vld [vmem:[#allocation2 + $0x8] sm:$0xff]
    %v87 = vld [vmem:[#allocation2 + $0x10] sm:$0xff]
    %v88 = vld [vmem:[#allocation2 + $0x18] sm:$0xff]
    %v89 = vld [vmem:[#allocation2 + $0x20] sm:$0xff]
    %v90 = vld [vmem:[#allocation2 + $0x28] sm:$0xff]
    %v91 = vld [vmem:[#allocation2 + $0x30] sm:$0xff]
    %v92 = vld [vmem:[#allocation2 + $0x38] sm:$0xff]
    %v93 = vld [vmem:[#allocation2 + $0x40] sm:$0xff]
    %v94 = vld [vmem:[#allocation2 + $0x48] sm:$0xff]
    %v95 = vld [vmem:[#allocation2 + $0x50] sm:$0xff]
    %v96 = vld [vmem:[#allocation2 + $0x58] sm:$0xff]
    %v97 = vld [vmem:[#allocation2 + $0x60] sm:$0xff]
    %v98 = vld [vmem:[#allocation2 + $0x68] sm:$0xff]
    %v99 = vld [vmem:[#allocation2 + $0x70] sm:$0xff]
    %v100 = vld [vmem:[#allocation2 + $0x78] sm:$0xff]
    %v101 = vld [vmem:[%s3] sm:$0x1]
    %v103 = vlaneseq
    %v104 = vshrl.u32 %v103, 7
    %v105 = vsub.s32 0, %v104
    %v106 = vrot.slane %v101, %v105
    %108 = vmatprep.subr.mxu0 0.0
    %109 = vmatpush1.msra.mxu0 %v85
    %110 = vmatprep.subr.mxu0 0.0
    %111 = vmatpush1.msra.mxu0 %v86
    %112 = vmatprep.subr.mxu0 0.0
    %113 = vmatpush1.msra.mxu0 %v87
    %114 = vmatprep.subr.mxu0 0.0
    %115 = vmatpush1.msra.mxu0 %v88
    %116 = vmatprep.subr.mxu0 0.0
    %117 = vmatpush1.msra.mxu0 %v89
    %118 = vmatprep.subr.mxu0 0.0
    %119 = vmatpush1.msra.mxu0 %v90
    %120 = vmatprep.subr.mxu0 0.0
    %121 = vmatpush1.msra.mxu0 %v91
    %122 = vmatprep.subr.mxu0 0.0
    %123 = vmatpush1.msra.mxu0 %v92
    %124 = vmatprep.subr.mxu0 0.0
    %125 = vmatpush1.msra.mxu0 %v93
    %126 = vmatprep.subr.mxu0 0.0
    %127 = vmatpush1.msra.mxu0 %v94
    %128 = vmatprep.subr.mxu0 0.0
    %129 = vmatpush1.msra.mxu0 %v95
    %130 = vmatprep.subr.mxu0 0.0
    %131 = vmatpush1.msra.mxu0 %v96
    %132 = vmatprep.subr.mxu0 0.0
    %133 = vmatpush1.msra.mxu0 %v97
    %134 = vmatprep.subr.mxu0 0.0
    %135 = vmatpush1.msra.mxu0 %v98
    %136 = vmatprep.subr.mxu0 0.0
    %137 = vmatpush1.msra.mxu0 %v99
    %138 = vmatprep.subr.mxu0 0.0
    %139 = vmatpush1.msra.mxu0 %v100
    %140 = vmatprep.subr.mxu0 0.0
    %141 = vmatpush1.msra.mxu0 0.0
    %142 = vmatprep.subr.mxu0 0.0
    %143 = vmatpush1.msra.mxu0 0.0
    %144 = vmatprep.subr.mxu0 0.0
    %145 = vmatpush1.msra.mxu0 0.0
    %146 = vmatprep.subr.mxu0 0.0
    %147 = vmatpush1.msra.mxu0 0.0
    %148 = vmatprep.subr.mxu0 0.0
    %149 = vmatpush1.msra.mxu0 0.0
    %150 = vmatprep.subr.mxu0 0.0
    %151 = vmatpush1.msra.mxu0 0.0
    %152 = vmatprep.subr.mxu0 0.0
    %153 = vmatpush1.msra.mxu0 0.0
    %154 = vmatprep.subr.mxu0 0.0
    %155 = vmatpush1.msra.mxu0 0.0
    %156 = vmatprep.subr.mxu0 0.0
    %157 = vmatpush1.msra.mxu0 0.0
    %158 = vmatprep.subr.mxu0 0.0
    %159 = vmatpush1.msra.mxu0 0.0
    %160 = vmatprep.subr.mxu0 0.0
    %161 = vmatpush1.msra.mxu0 0.0
    %162 = vmatprep.subr.mxu0 0.0
    %163 = vmatpush1.msra.mxu0 0.0
    %164 = vmatprep.subr.mxu0 0.0
    %165 = vmatpush1.msra.mxu0 0.0
    %166 = vmatprep.subr.mxu0 0.0
    %167 = vmatpush1.msra.mxu0 0.0
    %168 = vmatprep.subr.mxu0 0.0
    %169 = vmatpush1.msra.mxu0 0.0
    %170 = vmatprep.subr.mxu0 0.0
    %171 = vmatpush1.msra.mxu0 0.0
    %172 = vmatprep.mubr.f32.mxu0 0.0
    %173 = vmatmul.mubr.f32.gmra.mrb[0].mxu0 %v84
    %v174 = vpop.f32.mrb[0].mxu0
    %v175 = vadd.f32 %v106, %v174
    %v176 = vpop.f32.mrb[0].mxu0
    %177 = vdwg.mxu0
    %v178 = vmax.f32 %v175, 0.0
    %v179 = vld [vmem:[%s4] sm:$0x1]
    %v180 = vld [vmem:[%s5] sm:$0x1]
    %182 = vset.pattern.permute.xlu0 0
    %183 = vperm.xlu0 %182, %v83
    %v184 = vpop.permute.xlu0 %183
    %v186 = vmul.f32 %v178, %v184
    %v187 = vrot.slane %v186, 4
    %v188 = vadd.f32 %v186, %v187
    %v189 = vrot.slane %v188, 2
    %v190 = vadd.f32 %v188, %v189
    %v191 = vrot.slane %v190, 1
    %v192 = vadd.f32 %v190, %v191
    %v193 = vmul.f32 %v192, 0.125
    %v194 = vsub.f32 %v178, %v193
    %v195 = vmul.f32 %v194, %v184
    %v196 = vmul.f32 %v195, %v195
    %v197 = vrot.slane %v196, 4
    %v198 = vadd.f32 %v196, %v197
    %v199 = vrot.slane %v198, 2
    %v200 = vadd.f32 %v198, %v199
    %v201 = vrot.slane %v200, 1
    %v202 = vadd.f32 %v200, %v201
    %v203 = vmul.f32 %v202, 0.125
    %v204 = vadd.f32 %v203, 1e-05
    %v205 = vrsqrt.pop %v204
    %v207 = vlaneseq
    %v208 = vshrl.u32 %v207, 7
    %v209 = vsub.s32 0, %v208
    %v210 = vrot.slane %v179, %v209
    %v212 = vmul.f32 %v210, %v194
    %v213 = vmul.f32 %v212, %v205
    %v215 = vlaneseq
    %v216 = vshrl.u32 %v215, 7
    %v217 = vsub.s32 0, %v216
    %v218 = vrot.slane %v180, %v217
    %v220 = vadd.f32 %v213, %v218
    %v221 = vmul.f32 %v220, %v184
    %v222 = vld [vmem:[#allocation5] sm:$0xff]
    %v223 = vld [vmem:[#allocation5 + $0x8] sm:$0xff]
    %v224 = vld [vmem:[#allocation5 + $0x10] sm:$0xff]
    %v225 = vld [vmem:[#allocation5 + $0x18] sm:$0xff]
    %v226 = vld [vmem:[#allocation5 + $0x20] sm:$0xff]
    %v227 = vld [vmem:[#allocation5 + $0x28] sm:$0xff]
    %v228 = vld [vmem:[#allocation5 + $0x30] sm:$0xff]
    %v229 = vld [vmem:[#allocation5 + $0x38] sm:$0xff]
    %v230 = vld [vmem:[#allocation5 + $0x40] sm:$0xff]
    %v231 = vld [vmem:[#allocation5 + $0x48] sm:$0xff]
    %v232 = vld [vmem:[#allocation5 + $0x50] sm:$0xff]
    %v233 = vld [vmem:[#allocation5 + $0x58] sm:$0xff]
    %v234 = vld [vmem:[#allocation5 + $0x60] sm:$0xff]
    %v235 = vld [vmem:[#allocation5 + $0x68] sm:$0xff]
    %v236 = vld [vmem:[#allocation5 + $0x70] sm:$0xff]
    %v237 = vld [vmem:[#allocation5 + $0x78] sm:$0xff]
    %v238 = vld [vmem:[%s7] sm:$0x1]
    %v240 = vlaneseq
    %v241 = vshrl.u32 %v240, 7
    %v242 = vsub.s32 0, %v241
    %v243 = vrot.slane %v238, %v242
    %245 = vmatprep.subr.mxu0 0.0
    %246 = vmatpush1.msra.mxu0 %v222
    %247 = vmatprep.subr.mxu0 0.0
    %248 = vmatpush1.msra.mxu0 %v223
    %249 = vmatprep.subr.mxu0 0.0
    %250 = vmatpush1.msra.mxu0 %v224
    %251 = vmatprep.subr.mxu0 0.0
    %252 = vmatpush1.msra.mxu0 %v225
    %253 = vmatprep.subr.mxu0 0.0
    %254 = vmatpush1.msra.mxu0 %v226
    %255 = vmatprep.subr.mxu0 0.0
    %256 = vmatpush1.msra.mxu0 %v227
    %257 = vmatprep.subr.mxu0 0.0
    %258 = vmatpush1.msra.mxu0 %v228
    %259 = vmatprep.subr.mxu0 0.0
    %260 = vmatpush1.msra.mxu0 %v229
    %261 = vmatprep.subr.mxu0 0.0
    %262 = vmatpush1.msra.mxu0 %v230
    %263 = vmatprep.subr.mxu0 0.0
    %264 = vmatpush1.msra.mxu0 %v231
    %265 = vmatprep.subr.mxu0 0.0
    %266 = vmatpush1.msra.mxu0 %v232
    %267 = vmatprep.subr.mxu0 0.0
    %268 = vmatpush1.msra.mxu0 %v233
    %269 = vmatprep.subr.mxu0 0.0
    %270 = vmatpush1.msra.mxu0 %v234
    %271 = vmatprep.subr.mxu0 0.0
    %272 = vmatpush1.msra.mxu0 %v235
    %273 = vmatprep.subr.mxu0 0.0
    %274 = vmatpush1.msra.mxu0 %v236
    %275 = vmatprep.subr.mxu0 0.0
    %276 = vmatpush1.msra.mxu0 %v237
    %277 = vmatprep.subr.mxu0 0.0
    %278 = vmatpush1.msra.mxu0 0.0
    %279 = vmatprep.subr.mxu0 0.0
    %280 = vmatpush1.msra.mxu0 0.0
    %281 = vmatprep.subr.mxu0 0.0
    %282 = vmatpush1.msra.mxu0 0.0
    %283 = vmatprep.subr.mxu0 0.0
    %284 = vmatpush1.msra.mxu0 0.0
    %285 = vmatprep.subr.mxu0 0.0
    %286 = vmatpush1.msra.mxu0 0.0
    %287 = vmatprep.subr.mxu0 0.0
    %288 = vmatpush1.msra.mxu0 0.0
    %289 = vmatprep.subr.mxu0 0.0
    %290 = vmatpush1.msra.mxu0 0.0
    %291 = vmatprep.subr.mxu0 0.0
    %292 = vmatpush1.msra.mxu0 0.0
    %293 = vmatprep.subr.mxu0 0.0
    %294 = vmatpush1.msra.mxu0 0.0
    %295 = vmatprep.subr.mxu0 0.0
    %296 = vmatpush1.msra.mxu0 0.0
    %297 = vmatprep.subr.mxu0 0.0
    %298 = vmatpush1.msra.mxu0 0.0
    %299 = vmatprep.subr.mxu0 0.0
    %300 = vmatpush1.msra.mxu0 0.0
    %301 = vmatprep.subr.mxu0 0.0
    %302 = vmatpush1.msra.mxu0 0.0
    %303 = vmatprep.subr.mxu0 0.0
    %304 = vmatpush1.msra.mxu0 0.0
    %305 = vmatprep.subr.mxu0 0.0
    %306 = vmatpush1.msra.mxu0 0.0
    %307 = vmatprep.subr.mxu0 0.0
    %308 = vmatpush1.msra.mxu0 0.0
    %309 = vmatprep.mubr.f32.mxu0 0.0
    %310 = vmatmul.mubr.f32.gmra.mrb[0].mxu0 %v221
    %v311 = vpop.f32.mrb[0].mxu0
    %v312 = vadd.f32 %v243, %v311
    %v313 = vpop.f32.mrb[0].mxu0
    %314 = vdwg.mxu0
    %v315 = vmax.f32 %v312, 0.0
    %v316 = vld [vmem:[%s8] sm:$0x1]
    %v317 = vld [vmem:[%s9] sm:$0x1]
    %v318 = vmul.f32 %v315, %v184
    %v319 = vrot.slane %v318, 4
    %v320 = vadd.f32 %v318, %v319
    %v321 = vrot.slane %v320, 2
    %v322 = vadd.f32 %v320, %v321
    %v323 = vrot.slane %v322, 1
    %v324 = vadd.f32 %v322, %v323
    %v325 = vmul.f32 %v324, 0.125
    %v326 = vsub.f32 %v315, %v325
    %v327 = vmul.f32 %v326, %v184
    %v328 = vmul.f32 %v327, %v327
    %v329 = vrot.slane %v328, 4
    %v330 = vadd.f32 %v328, %v329
    %v331 = vrot.slane %v330, 2
    %v332 = vadd.f32 %v330, %v331
    %v333 = vrot.slane %v332, 1
    %v334 = vadd.f32 %v332, %v333
    %v335 = vmul.f32 %v334, 0.125
    %v336 = vadd.f32 %v335, 1e-05
    %v337 = vrsqrt.pop %v336
    %v339 = vlaneseq
    %v340 = vshrl.u32 %v339, 7
    %v341 = vsub.s32 0, %v340
    %v342 = vrot.slane %v316, %v341
    %v344 = vmul.f32 %v342, %v326
    %v345 = vmul.f32 %v344, %v337
    %v347 = vlaneseq
    %v348 = vshrl.u32 %v347, 7
    %v349 = vsub.s32 0, %v348
    %v350 = vrot.slane %v317, %v349
    %v352 = vadd.f32 %v345, %v350
    %v353 = vmul.f32 %v352, %v184
    %v354 = vld [vmem:[#allocation7] sm:$0xff]
    %v355 = vld [vmem:[#allocation7 + $0x8] sm:$0xff]
    %v356 = vld [vmem:[#allocation7 + $0x10] sm:$0xff]
    %v357 = vld [vmem:[#allocation7 + $0x18] sm:$0xff]
    %v358 = vld [vmem:[#allocation7 + $0x20] sm:$0xff]
    %v359 = vld [vmem:[#allocation7 + $0x28] sm:$0xff]
    %v360 = vld [vmem:[#allocation7 + $0x30] sm:$0xff]
    %v361 = vld [vmem:[#allocation7 + $0x38] sm:$0xff]
    %v362 = vld [vmem:[#allocation7 + $0x40] sm:$0xff]
    %v363 = vld [vmem:[#allocation7 + $0x48] sm:$0xff]
    %v364 = vld [vmem:[#allocation7 + $0x50] sm:$0xff]
    %v365 = vld [vmem:[#allocation7 + $0x58] sm:$0xff]
    %v366 = vld [vmem:[#allocation7 + $0x60] sm:$0xff]
    %v367 = vld [vmem:[#allocation7 + $0x68] sm:$0xff]
    %v368 = vld [vmem:[#allocation7 + $0x70] sm:$0xff]
    %v369 = vld [vmem:[#allocation7 + $0x78] sm:$0xff]
    %v370 = vld [vmem:[%s11] sm:$0x1]
    %v372 = vlaneseq
    %v373 = vshrl.u32 %v372, 7
    %v374 = vsub.s32 0, %v373
    %v375 = vrot.slane %v370, %v374
    %377 = vmatprep.subr.mxu0 0.0
    %378 = vmatpush1.msra.mxu0 %v354
    %379 = vmatprep.subr.mxu0 0.0
    %380 = vmatpush1.msra.mxu0 %v355
    %381 = vmatprep.subr.mxu0 0.0
    %382 = vmatpush1.msra.mxu0 %v356
    %383 = vmatprep.subr.mxu0 0.0
    %384 = vmatpush1.msra.mxu0 %v357
    %385 = vmatprep.subr.mxu0 0.0
    %386 = vmatpush1.msra.mxu0 %v358
    %387 = vmatprep.subr.mxu0 0.0
    %388 = vmatpush1.msra.mxu0 %v359
    %389 = vmatprep.subr.mxu0 0.0
    %390 = vmatpush1.msra.mxu0 %v360
    %391 = vmatprep.subr.mxu0 0.0
    %392 = vmatpush1.msra.mxu0 %v361
    %393 = vmatprep.subr.mxu0 0.0
    %394 = vmatpush1.msra.mxu0 %v362
    %395 = vmatprep.subr.mxu0 0.0
    %396 = vmatpush1.msra.mxu0 %v363
    %397 = vmatprep.subr.mxu0 0.0
    %398 = vmatpush1.msra.mxu0 %v364
    %399 = vmatprep.subr.mxu0 0.0
    %400 = vmatpush1.msra.mxu0 %v365
    %401 = vmatprep.subr.mxu0 0.0
    %402 = vmatpush1.msra.mxu0 %v366
    %403 = vmatprep.subr.mxu0 0.0
    %404 = vmatpush1.msra.mxu0 %v367
    %405 = vmatprep.subr.mxu0 0.0
    %406 = vmatpush1.msra.mxu0 %v368
    %407 = vmatprep.subr.mxu0 0.0
    %408 = vmatpush1.msra.mxu0 %v369
    %409 = vmatprep.subr.mxu0 0.0
    %410 = vmatpush1.msra.mxu0 0.0
    %411 = vmatprep.subr.mxu0 0.0
    %412 = vmatpush1.msra.mxu0 0.0
    %413 = vmatprep.subr.mxu0 0.0
    %414 = vmatpush1.msra.mxu0 0.0
    %415 = vmatprep.subr.mxu0 0.0
    %416 = vmatpush1.msra.mxu0 0.0
    %417 = vmatprep.subr.mxu0 0.0
    %418 = vmatpush1.msra.mxu0 0.0
    %419 = vmatprep.subr.mxu0 0.0
    %420 = vmatpush1.msra.mxu0 0.0
    %421 = vmatprep.subr.mxu0 0.0
    %422 = vmatpush1.msra.mxu0 0.0
    %423 = vmatprep.subr.mxu0 0.0
    %424 = vmatpush1.msra.mxu0 0.0
    %425 = vmatprep.subr.mxu0 0.0
    %426 = vmatpush1.msra.mxu0 0.0
    %427 = vmatprep.subr.mxu0 0.0
    %428 = vmatpush1.msra.mxu0 0.0
    %429 = vmatprep.subr.mxu0 0.0
    %430 = vmatpush1.msra.mxu0 0.0
    %431 = vmatprep.subr.mxu0 0.0
    %432 = vmatpush1.msra.mxu0 0.0
    %433 = vmatprep.subr.mxu0 0.0
    %434 = vmatpush1.msra.mxu0 0.0
    %435 = vmatprep.subr.mxu0 0.0
    %436 = vmatpush1.msra.mxu0 0.0
    %437 = vmatprep.subr.mxu0 0.0
    %438 = vmatpush1.msra.mxu0 0.0
    %439 = vmatprep.subr.mxu0 0.0
    %440 = vmatpush1.msra.mxu0 0.0
    %441 = vmatprep.mubr.f32.mxu0 0.0
    %442 = vmatmul.mubr.f32.gmra.mrb[0].mxu0 %v353
    %v443 = vpop.f32.mrb[0].mxu0
    %v444 = vadd.f32 %v375, %v443
    %v445 = vpop.f32.mrb[0].mxu0
    %446 = vdwg.mxu0
    %v447 = vmax.f32 %v444, 0.0
    %448 = vst [vmem:[#allocation8] sm:$0xff] %v447
    // Predicated region
    $region62: #{tpu_custom_call.1} parent=1 // pred_check
      _
    $region63: #{tpu_custom_call.1} parent=1 // pred_check_branch
      %450 = sbr.rel (0) target = $region65
    $region64: #{tpu_custom_call.1} parent=1 // pred_region
      %s452 = ssub.s32 128, 128
      %453 = vsyncadd [#allocation4], %s452
      %s455 = sshll.u32 [#allocation8], 4
      %s456 = int_to_ptr.vmem [resolvable:$true] %s455
      %458 = dma.vmem_to_hbm [thread:$0]  %s456, 128, %s12, [#allocation4]
    $region65: #{tpu_custom_call.1} parent=1 // pred_fallthru
      _
    // Predicated region
    $region66: #{tpu_custom_call.1} parent=1 // pred_check
      _
    $region67: #{tpu_custom_call.1} parent=1 // pred_check_branch
      %460 = sbr.rel (0) target = $region69
    $region68: #{tpu_custom_call.1} parent=1 // pred_region
      %461 = dma.done [#allocation4], 128
    $region69: #{tpu_custom_call.1} parent=1 // pred_fallthru
      _
    %462 = vsyncpa [#allocation3], 1
    %463 = vsyncpa [#allocation6], 1
    %464 = vsyncpa [#allocation4], 1

</llo_original>
